<compile_context>
chip_gen: v6e
topology: v6e:2x2x1
jax: 0.10.0
libtpu: 0.0.40
codegen_flags: <defaults>
</compile_context>

<pallas_src>
import functools

import jax
import jax.numpy as jnp
from jax import lax
from jax.experimental import pallas as pl
from jax.experimental.pallas import tpu as pltpu

_LANES = 128      # TPU vreg lane width
_SUBLANES = 8     # TPU vreg sublane count (f32)

# Conservative single-slab ceiling that fits every listed generation
# (v7x: 64 MiB physical / 32 MiB scoped-default VMEM per TensorCore).
_SLAB_LIMIT_BYTES = 20 * 1024 * 1024


def _global_softmax_kernel(x_ref, o_ref, *, valid):
    """Softmax over ALL elements of a lane-dense (rows, lanes) slab.

    `valid` is the number of real (un-padded) elements, or None if the slab
    is exactly full.  Padded tail elements are masked to -inf in f32 so they
    never win the max and contribute exp(-inf) = 0 to the sum.
    """
    x = x_ref[...].astype(jnp.float32)

    if valid is not None:
        rows, lanes = x_ref.shape
        flat_idx = (lax.broadcasted_iota(jnp.int32, (rows, lanes), 0) * lanes
                    + lax.broadcasted_iota(jnp.int32, (rows, lanes), 1))
        x = jnp.where(flat_idx < valid, x, -jnp.inf)

    # Two-stage max: per-row lane reduce (XLU), then a tiny cross-sublane reduce.
    row_max = jnp.max(x, axis=-1, keepdims=True)        # (rows, 1)
    x_max = jnp.max(row_max, axis=0, keepdims=True)     # (1, 1)

    e = jnp.exp(x - x_max)                               # EUP transcendental

    # Two-stage sum, same structure as the max.
    row_sum = jnp.sum(e, axis=-1, keepdims=True)         # (rows, 1)
    denom = jnp.sum(row_sum, axis=0, keepdims=True)      # (1, 1)

    # Exact reciprocal: single (1,1) op, accuracy is free here.
    inv = pl.reciprocal(denom, approx=False)

    if o_ref.dtype == jnp.float32:
        # In-place rescale: e's live range ends at the first store, so we never
        # hold x, e and the result as three full-size f32 temps simultaneously.
        o_ref[...] = e
        o_ref[...] = o_ref[...] * inv
    else:
        o_ref[...] = (e * inv).astype(o_ref.dtype)


def _pick_slab_shape(size: int) -> tuple[int, int]:
    """Choose a lane-dense (rows, lanes) slab shape for `size` elements.

    Prefers the widest lanes (multiple of 128) with rows a multiple of 8, so
    stores are full unmasked vst; falls back to 128 lanes with rows padded up
    to a multiple of 8 (tail masked in-kernel).
    """
    # Exact factorization, sublane-aligned rows.
    for lanes in (4096, 2048, 1024, 512, 256, 128):
        if size % lanes == 0 and (size // lanes) % _SUBLANES == 0:
            return size // lanes, lanes
    # Exact lane-dense factorization without the sublane constraint.
    for lanes in (4096, 2048, 1024, 512, 256, 128):
        if size % lanes == 0:
            return size // lanes, lanes
    # General case: 128 lanes, rows rounded up to a multiple of 8.
    rows = pl.cdiv(size, _LANES)
    rows = pl.cdiv(rows, _SUBLANES) * _SUBLANES
    return rows, _LANES


def global_softmax(x: jax.Array) -> jax.Array:
    """Reproduces: exp(x - x.max()) / exp(x - x.max()).sum()  (global reduction)."""
    orig_shape = x.shape
    orig_dtype = x.dtype
    size = x.size

    rows, lanes = _pick_slab_shape(size)
    padded_size = rows * lanes

    flat = x.reshape(-1)
    if padded_size != size:
        # Dtype-safe zero pad; the kernel masks the tail itself, so we never
        # need -inf to be representable in the input dtype.
        flat = jnp.pad(flat, (0, padded_size - size))
        valid = size
    else:
        valid = None
    x2d = flat.reshape(rows, lanes)

    # Explicit VMEM budget: input slab + output slab + ~1 full-size f32 temp.
    itemsize = jnp.dtype(orig_dtype).itemsize
    resident_bytes = padded_size * (2 * itemsize + 4)
    if resident_bytes > _SLAB_LIMIT_BYTES:
        # TODO(synk): switch to the tiled two-pass softmax described above.
        raise NotImplementedError(
            f"global_softmax single-slab path needs ~{resident_bytes} B of VMEM, "
            f"exceeding the {_SLAB_LIMIT_BYTES} B per-TensorCore budget; the "
            "tiled two-pass path is not implemented.")
    vmem_limit = int(min(32 * 1024 * 1024,
                         max(4 * 1024 * 1024, 2 * resident_bytes)))

    out2d = pl.pallas_call(
        functools.partial(_global_softmax_kernel, valid=valid),
        out_shape=jax.ShapeDtypeStruct((rows, lanes), orig_dtype),
        # Whole-array VMEM residency; no grid, no pipelining scaffolding.
        in_specs=[pl.BlockSpec(memory_space=pltpu.MemorySpace.VMEM)],
        out_specs=pl.BlockSpec(memory_space=pltpu.MemorySpace.VMEM),
        # Output has identical shape/dtype to the (wrapper-local) input slab:
        # reuse its HBM buffer instead of allocating a fresh one.
        input_output_aliases={0: 0},
        compiler_params=pltpu.CompilerParams(vmem_limit_bytes=vmem_limit),
    )(x2d)

    out_flat = out2d.reshape(-1)
    if padded_size != size:
        out_flat = out_flat[:size]
    return out_flat.reshape(orig_shape)


if __name__ == "__main__":
    key = jax.random.PRNGKey(0)
    # NCHW activation: batch=2, channels=4, 16x16 spatial (2048 elements).
    x = jax.random.normal(key, (2, 4, 16, 16), dtype=jnp.float32)

    out = global_softmax(x)
    out = jax.block_until_ready(out)

    # Pure-JAX reference of the PyTorch forward.
    x_max = jnp.max(x)
    e = jnp.exp(x - x_max)
    ref = e / jnp.sum(e)

    assert out.shape == x.shape
    assert out.dtype == x.dtype
    assert jnp.allclose(out, ref, atol=1e-9, rtol=1e-5), "mismatch vs reference"
    assert jnp.allclose(jnp.sum(out), 1.0, atol=1e-5), "softmax does not sum to 1"

    print("KERNEL_OK")
</pallas_src>

<mosaic_0001>
module attributes {stable_mosaic.version = 11 : i64} {
  func.func @_global_softmax_kernel(%arg0: memref<8x256xf32, #tpu.memory_space<vmem>>, %arg1: memref<8x256xf32, #tpu.memory_space<vmem>>) attributes {dimension_semantics = [], scalar_prefetch = 0 : i64, scratch_operands = 0 : i64, tpu.core_type = #tpu.core_type<tc>} {
    %c0 = arith.constant 0 : index
    %c0_0 = arith.constant 0 : index
    %0 = vector.load %arg0[%c0, %c0_0] : memref<8x256xf32, #tpu.memory_space<vmem>>, vector<8x256xf32>
    %cst = arith.constant dense<0xFF800000> : vector<8xf32>
    %1 = vector.multi_reduction <maximumf>, %0, %cst [1] : vector<8x256xf32> to vector<8xf32>
    %2 = vector.shape_cast %1 : vector<8xf32> to vector<8x1xf32>
    %cst_1 = arith.constant dense<0xFF800000> : vector<1xf32>
    %3 = vector.multi_reduction <maximumf>, %2, %cst_1 [0] : vector<8x1xf32> to vector<1xf32>
    %4 = vector.shape_cast %3 : vector<1xf32> to vector<1x1xf32>
    %5 = vector.broadcast %4 : vector<1x1xf32> to vector<8x256xf32>
    %6 = arith.subf %0, %5 : vector<8x256xf32>
    %7 = math.exp %6 : vector<8x256xf32>
    %cst_2 = arith.constant dense<0.000000e+00> : vector<8xf32>
    %8 = vector.multi_reduction <add>, %7, %cst_2 [1] : vector<8x256xf32> to vector<8xf32>
    %9 = vector.shape_cast %8 : vector<8xf32> to vector<8x1xf32>
    %cst_3 = arith.constant dense<0.000000e+00> : vector<1xf32>
    %10 = vector.multi_reduction <add>, %9, %cst_3 [0] : vector<8x1xf32> to vector<1xf32>
    %11 = vector.shape_cast %10 : vector<1xf32> to vector<1x1xf32>
    %12 = tpu.reciprocal %11 : vector<1x1xf32> -> vector<1x1xf32>
    %c0_4 = arith.constant 0 : index
    %c0_5 = arith.constant 0 : index
    %13 = vector.load %arg1[%c0_4, %c0_5] : memref<8x256xf32, #tpu.memory_space<vmem>>, vector<8x256xf32>
    tpu.vector_store %arg1[%c0_4, %c0_5], %7 {strides = array<i32>} : memref<8x256xf32, #tpu.memory_space<vmem>>, vector<8x256xf32>,
    %c0_6 = arith.constant 0 : index
    %c0_7 = arith.constant 0 : index
    %14 = vector.load %arg1[%c0_6, %c0_7] : memref<8x256xf32, #tpu.memory_space<vmem>>, vector<8x256xf32>
    %15 = vector.broadcast %12 : vector<1x1xf32> to vector<8x256xf32>
    %16 = arith.mulf %14, %15 : vector<8x256xf32>
    %c0_8 = arith.constant 0 : index
    %c0_9 = arith.constant 0 : index
    %17 = vector.load %arg1[%c0_8, %c0_9] : memref<8x256xf32, #tpu.memory_space<vmem>>, vector<8x256xf32>
    tpu.vector_store %arg1[%c0_8, %c0_9], %16 {strides = array<i32>} : memref<8x256xf32, #tpu.memory_space<vmem>>, vector<8x256xf32>,
    return
  }
}

</mosaic_0001>

<llo_original>
// kernel: tpu_custom_call.1
$region0: #{tpu_custom_call.1}
  #allocation0 [shape = 'u32[]', space=smem, size = 0x4, offset = 0x4, fixed_abs, tag = 'smem constant byte address 0x4 - core index']
  #allocation1 [shape = 'u32[144,128]{1,0:T(1,128)}', space=vmem, size = 0x12000, scoped, tag = 'internal scratch']
  %s0 = inlined_call_operand.hbm [shape: f32[8,256], index: 0, kind: input, shape index: {}, may-alias: {0,1}]
  %s1 = inlined_call_operand.hbm [shape: f32[8,256], index: 1, kind: output, shape index: {}, may-alias: {0,1}]
  %s2 = sld [smem:[#allocation0]]
  $region18: #{tpu_custom_call.1} parent=0
    _
  %s4 = ssub.s32 1, %s2
  %s5 = scalar_select 0, %s4, %s2
  $region1: #{tpu_custom_call.1} parent=0
    #allocation2 [shape = 'u8[8192]{0}', space=vmem, size = 0x2000, scoped, tag = 'input window, operand 0, single buffered']
    #allocation3 [shape = 's32[1]{0}', space=sflag, size = 0x4, scoped, tag = 'scoped memory for tpu_custom_call.1']
    #allocation4 [shape = 's32[1]{0}', space=sflag, size = 0x4, scoped, tag = 'scoped memory for tpu_custom_call.1']
    #allocation5 [shape = 'u8[8192]{0}', space=vmem, size = 0x2000, scoped, tag = 'output window, operand 0, single buffered']
    %6 = vsyncpa [#allocation3], 0
    %7 = vsyncpa [#allocation4], 0
    // Predicated region
    $region2: #{tpu_custom_call.1} parent=1 // pred_check
      _
    $region3: #{tpu_custom_call.1} parent=1 // pred_check_branch
      %9 = sbr.rel (0) target = $region5
    $region4: #{tpu_custom_call.1} parent=1 // pred_region
      %s11 = ssub.s32 256, 256
      %12 = vsyncadd [#allocation3], %s11
      %s14 = sshll.u32 [#allocation2], 4
      %s15 = int_to_ptr.vmem [resolvable:$true] %s14
      %17 = dma.hbm_to_vmem [thread:$0]  %s0, 256, %s15, [#allocation3]
    $region5: #{tpu_custom_call.1} parent=1 // pred_fallthru
      _
    // Predicated region
    $region6: #{tpu_custom_call.1} parent=1 // pred_check
      _
    $region7: #{tpu_custom_call.1} parent=1 // pred_check_branch
      %19 = sbr.rel (0) target = $region9
    $region8: #{tpu_custom_call.1} parent=1 // pred_region
      %20 = dma.done [#allocation3], 256
    $region9: #{tpu_custom_call.1} parent=1 // pred_fallthru
      _
    %v21 = vld [vmem:[#allocation2] sm:$0xff]
    %v22 = vld [vmem:[#allocation2 + $0x8] sm:$0xff]
    %v23 = vmax.f32 %v21, %v22
    %24 = vmax.xlane.f32.xlu0 %v23
    %v25 = vpop.xlane.xlu0 %24
    %v26 = vrot.slane %v25, 4
    %v27 = vmax.f32 %v25, %v26
    %v28 = vrot.slane %v27, 2
    %v29 = vmax.f32 %v27, %v28
    %v30 = vrot.slane %v29, 1
    %v31 = vmax.f32 %v29, %v30
    %v32 = vsub.f32 %v21, %v31
    %v33 = vsub.f32 %v22, %v31
    %v34 = vmul.f32 %v32, 1.442695
    %v35 = vpow.pop %v34
    %v36 = vmul.f32 %v33, 1.442695
    %v37 = vpow.pop %v36
    %v38 = vadd.f32 %v35, %v37
    %39 = vadd.xlane.f32.xlu0 %v38
    %v40 = vpop.xlane.xlu0 %39
    %v41 = vrot.slane %v40, 4
    %v42 = vadd.f32 %v40, %v41
    %v43 = vrot.slane %v42, 2
    %v44 = vadd.f32 %v42, %v43
    %v45 = vrot.slane %v44, 1
    %v46 = vadd.f32 %v44, %v45
    %v47 = vrcp.pop %v46
    %48 = vst [vmem:[#allocation5] sm:$0xff] %v35
    %49 = vst [vmem:[#allocation5 + $0x8] sm:$0xff] %v37
    %v50 = vld [vmem:[#allocation5] sm:$0xff]
    %v51 = vld [vmem:[#allocation5 + $0x8] sm:$0xff]
    %v52 = vmul.f32 %v50, %v47
    %v53 = vmul.f32 %v51, %v47
    %54 = vst [vmem:[#allocation5] sm:$0xff] %v52
    %55 = vst [vmem:[#allocation5 + $0x8] sm:$0xff] %v53
    // Predicated region
    $region10: #{tpu_custom_call.1} parent=1 // pred_check
      _
    $region11: #{tpu_custom_call.1} parent=1 // pred_check_branch
      %57 = sbr.rel (0) target = $region13
    $region12: #{tpu_custom_call.1} parent=1 // pred_region
      %s59 = ssub.s32 256, 256
      %60 = vsyncadd [#allocation4], %s59
      %s62 = sshll.u32 [#allocation5], 4
      %s63 = int_to_ptr.vmem [resolvable:$true] %s62
      %65 = dma.vmem_to_hbm [thread:$0]  %s63, 256, %s1, [#allocation4]
    $region13: #{tpu_custom_call.1} parent=1 // pred_fallthru
      _
    // Predicated region
    $region14: #{tpu_custom_call.1} parent=1 // pred_check
      _
    $region15: #{tpu_custom_call.1} parent=1 // pred_check_branch
      %67 = sbr.rel (0) target = $region17
    $region16: #{tpu_custom_call.1} parent=1 // pred_region
      %68 = dma.done [#allocation4], 256
    $region17: #{tpu_custom_call.1} parent=1 // pred_fallthru
      _
    %69 = vsyncpa [#allocation3], 1
    %70 = vsyncpa [#allocation4], 1

</llo_original>
